<compile_context>
chip_gen: v7x
topology: tpu7x:2x2x1
jax: 0.10.0
libtpu: 0.0.40
codegen_flags: <defaults>
</compile_context>

<pallas_src>
import functools

import jax
import jax.numpy as jnp
from jax import lax
from jax.experimental import pallas as pl
from jax.experimental.pallas import tpu as pltpu


_VMEM_LIMIT = 48 * 1024 * 1024   # explicit scoped-VMEM cap (> v5e 16MiB default,
                                 # < v7x 64MiB physical)


# ----------------------------------------------------------------------------
# Small helpers: padding + tile selection
# ----------------------------------------------------------------------------
def _round_up(x, m):
    return (x + m - 1) // m * m


def _pad_to(x, axis, new_size, value=0.0):
    if x.shape[axis] == new_size:
        return x
    widths = [(0, 0)] * x.ndim
    widths[axis] = (0, new_size - x.shape[axis])
    return jnp.pad(x, widths, constant_values=value)


def _pad_gate_cols(w, h, h_pad):
    """(..., 4*h) with gate layout [i|f|g|o] -> (..., 4*h_pad), zero pad per gate."""
    if h == h_pad:
        return w
    lead = w.shape[:-1]
    w = w.reshape(lead + (4, h))
    w = _pad_to(w, -1, h_pad)
    return w.reshape(lead + (4 * h_pad,))


def _largest_tile(n, cands):
    for c in cands:
        if c <= n and n % c == 0:
            return c
    return n


def _time_chunk(t, b_pad, e, h_pad, budget_bytes=8 * 1024 * 1024):
    """Largest time chunk (divisor of T) whose streamed buffers fit the budget."""
    for cand in (64, 32, 16, 8, 4, 2, 1):
        if t % cand != 0:
            continue
        # 2x e-chunk (dbl buf) + 2x hs-chunk (dbl buf) + gx scratch, all f32.
        chunk_bytes = cand * b_pad * (2 * e + 6 * h_pad) * 4
        if chunk_bytes <= budget_bytes or cand == 1:
            return cand
    return 1


def _row_tile(n, v_pad):
    """Row tile for the output projection; caps the row-resident (tn, V) output
    slab (x2 buffers) + logits scratch at ~24 MiB so it fits every generation."""
    cap = (24 * 1024 * 1024) // (12 * v_pad)
    cap = max(8, (cap // 8) * 8)
    return max(8, min(512, cap, _round_up(n, 8)))


def _vocab_tile(v_pad):
    for cand in (2048, 1024, 512, 256, 128):
        if v_pad % cand == 0:
            return cand
    return v_pad


# ----------------------------------------------------------------------------
# Initial-state projections (JHCE2h / JHCE2c), fused in one kernel,
# tiled over batch rows ("parallel").
# ----------------------------------------------------------------------------
def _init_state_kernel(emb_ref, w2h_ref, b2h_ref, w2c_ref, b2c_ref,
                       h0_ref, c0_ref):
    h0_ref[...] = (jnp.dot(emb_ref[...], w2h_ref[...],
                           preferred_element_type=jnp.float32) + b2h_ref[...])
    c0_ref[...] = (jnp.dot(emb_ref[...], w2c_ref[...],
                           preferred_element_type=jnp.float32) + b2c_ref[...])


def pallas_init_state(emb_p, w2h_p, b2h_p, w2c_p, b2c_p):
    Bp, W = emb_p.shape
    Hp = w2h_p.shape[1]
    rb = _largest_tile(Bp, (512, 256, 128, 64, 32, 16, 8))
    return pl.pallas_call(
        _init_state_kernel,
        out_shape=(jax.ShapeDtypeStruct((Bp, Hp), jnp.float32),
                   jax.ShapeDtypeStruct((Bp, Hp), jnp.float32)),
        grid_spec=pltpu.PrefetchScalarGridSpec(
            num_scalar_prefetch=0,
            grid=(Bp // rb,),
            in_specs=[
                pl.BlockSpec((rb, W), lambda i: (i, 0)),
                pl.BlockSpec((W, Hp), lambda i: (0, 0)),
                pl.BlockSpec((1, Hp), lambda i: (0, 0)),
                pl.BlockSpec((W, Hp), lambda i: (0, 0)),
                pl.BlockSpec((1, Hp), lambda i: (0, 0)),
            ],
            out_specs=[
                pl.BlockSpec((rb, Hp), lambda i: (i, 0)),
                pl.BlockSpec((rb, Hp), lambda i: (i, 0)),
            ],
        ),
        compiler_params=pltpu.CompilerParams(
            dimension_semantics=("parallel",),
            vmem_limit_bytes=_VMEM_LIMIT),
    )(emb_p, w2h_p, b2h_p, w2c_p, b2c_p)


# ----------------------------------------------------------------------------
# LSTM recurrence, chunked over T.  Per chunk: one batched input-projection
# MXU matmul into VMEM scratch (no gx HBM round trip), then the recurrence.
# h/c carried across chunks in persistent VMEM scratch.
# Gate order matches PyTorch nn.LSTMCell: i, f, g, o.
# ----------------------------------------------------------------------------
def _lstm_kernel(e_ref, wih_ref, whh_ref, b_ref, h0_ref, c0_ref,
                 hs_ref, hT_ref, cT_ref, h_scr, c_scr, gx_scr, *, Tc, Bp):
    tchunk = pl.program_id(0)

    @pl.when(tchunk == 0)
    def _():
        h_scr[...] = h0_ref[...]
        c_scr[...] = c0_ref[...]

    Hp = whh_ref.shape[0]
    w_hh = whh_ref[...]                       # resident across the chunk loop

    # Hoisted, chunk-batched input projection: ONE MXU matmul for all Tc steps
    # of this chunk, kept in VMEM scratch (never written to HBM).
    gx_scr[...] = (jnp.dot(e_ref[...], wih_ref[...],
                           preferred_element_type=jnp.float32) + b_ref[...])

    def step(t, carry):
        h, c = carry
        row = pl.multiple_of(t * Bp, Bp)
        gates = gx_scr[pl.ds(row, Bp), :] + jnp.dot(
            h, w_hh, preferred_element_type=jnp.float32)
        i_g = jax.nn.sigmoid(gates[:, 0 * Hp:1 * Hp])   # lane-aligned (Hp%128==0)
        f_g = jax.nn.sigmoid(gates[:, 1 * Hp:2 * Hp])
        g_g = jnp.tanh(gates[:, 2 * Hp:3 * Hp])
        o_g = jax.nn.sigmoid(gates[:, 3 * Hp:4 * Hp])
        c_new = f_g * c + i_g * g_g
        h_new = o_g * jnp.tanh(c_new)
        hs_ref[pl.ds(row, Bp), :] = h_new
        return (h_new, c_new)

    init = (h_scr[...], c_scr[...])
    if Tc % 2 == 0:
        # Manual 2x unroll: lets the scheduler overlap the VPU/EUP gate math
        # of step t with the W_hh MXU push of step t+1.
        def two_steps(k, carry):
            return step(2 * k + 1, step(2 * k, carry))
        h_fin, c_fin = lax.fori_loop(0, Tc // 2, two_steps, init)
    else:
        h_fin, c_fin = lax.fori_loop(0, Tc, step, init)

    h_scr[...] = h_fin
    c_scr[...] = c_fin

    @pl.when(tchunk == pl.num_programs(0) - 1)
    def _():
        hT_ref[...] = h_fin
        cT_ref[...] = c_fin


def pallas_lstm(e2, w_ih_p, w_hh_p, b_p, h0, c0, *, T, B_pad, Tc):
    # e2: (T*B_pad, E); weights pre-transposed/padded; h0/c0: (B_pad, Hp)
    E = e2.shape[1]
    Bp, Hp = h0.shape
    G = 4 * Hp
    rows = Tc * B_pad
    n_tc = T // Tc

    # TODO(synk): for very large H, also stream W_hh/W_ih (bf16) instead of
    # keeping the full f32 weights resident, and split B across v7x's 2 TCs
    # with a leading "parallel" batch grid axis when B_pad >= 16.
    kernel = functools.partial(_lstm_kernel, Tc=Tc, Bp=B_pad)
    return pl.pallas_call(
        kernel,
        out_shape=(jax.ShapeDtypeStruct((T * B_pad, Hp), jnp.float32),
                   jax.ShapeDtypeStruct((B_pad, Hp), jnp.float32),
                   jax.ShapeDtypeStruct((B_pad, Hp), jnp.float32)),
        grid_spec=pltpu.PrefetchScalarGridSpec(
            num_scalar_prefetch=0,
            grid=(n_tc,),
            in_specs=[
                pl.BlockSpec((rows, E), lambda t: (t, 0)),
                pl.BlockSpec((E, G), lambda t: (0, 0)),
                pl.BlockSpec((Hp, G), lambda t: (0, 0)),
                pl.BlockSpec((1, G), lambda t: (0, 0)),
                pl.BlockSpec((B_pad, Hp), lambda t: (0, 0)),
                pl.BlockSpec((B_pad, Hp), lambda t: (0, 0)),
            ],
            out_specs=[
                pl.BlockSpec((rows, Hp), lambda t: (t, 0)),
                pl.BlockSpec((B_pad, Hp), lambda t: (0, 0)),
                pl.BlockSpec((B_pad, Hp), lambda t: (0, 0)),
            ],
            scratch_shapes=[
                pltpu.VMEM((B_pad, Hp), jnp.float32),   # h carry
                pltpu.VMEM((B_pad, Hp), jnp.float32),   # c carry
                pltpu.VMEM((rows, G), jnp.float32),     # per-chunk gates_x
            ]),
        compiler_params=pltpu.CompilerParams(
            dimension_semantics=("arbitrary",),          # sequential recurrence
            vmem_limit_bytes=_VMEM_LIMIT),
    )(e2, w_ih_p, w_hh_p, b_p, h0, c0)


# ----------------------------------------------------------------------------
# Output projection + log_softmax in a SINGLE pass.
# Grid (rows "parallel", vocab "arbitrary").  Per vocab tile: one matmul,
# online max/logsumexp update, logits stashed in VMEM scratch.  At the last
# vocab tile the row-resident (tn, V) output block is normalized and written
# with static lane-aligned column slices.  W_out is streamed exactly once.
# ----------------------------------------------------------------------------
def _logsoftmax_kernel(h_ref, w_ref, b_ref, o_ref, m_scr, s_scr, l_scr, *,
                       tv, nj):
    j = pl.program_id(1)

    @pl.when(j == 0)
    def _():
        m_scr[...] = jnp.full(m_scr.shape, -jnp.inf, m_scr.dtype)
        s_scr[...] = jnp.zeros(s_scr.shape, s_scr.dtype)

    logits = (jnp.dot(h_ref[...], w_ref[...],
                      preferred_element_type=jnp.float32) + b_ref[...])
    m_prev = m_scr[...]
    m_new = jnp.maximum(m_prev, jnp.max(logits, axis=-1, keepdims=True))
    s_scr[...] = (s_scr[...] * jnp.exp(m_prev - m_new)
                  + jnp.sum(jnp.exp(logits - m_new), axis=-1, keepdims=True))
    m_scr[...] = m_new
    l_scr[j] = logits                    # stash unnormalized logits in VMEM

    @pl.when(j == nj - 1)
    def _():
        corr = m_scr[...] + jnp.log(s_scr[...])
        for jj in range(nj):             # static, lane-aligned column writes
            o_ref[:, jj * tv:(jj + 1) * tv] = l_scr[jj] - corr


def pallas_logits_logsoftmax(h_flat, w_out_p, b_out_p):
    N, Hp = h_flat.shape
    Vp = w_out_p.shape[1]
    tn = _row_tile(N, Vp)
    N_pad = _round_up(N, tn)
    h_pad = _pad_to(h_flat, 0, N_pad)
    tv = _vocab_tile(Vp)
    nj = Vp // tv
    ni = N_pad // tn

    kernel = functools.partial(_logsoftmax_kernel, tv=tv, nj=nj)
    out = pl.pallas_call(
        kernel,
        out_shape=jax.ShapeDtypeStruct((N_pad, Vp), jnp.float32),
        grid_spec=pltpu.PrefetchScalarGridSpec(
            num_scalar_prefetch=0,
            grid=(ni, nj),
            in_specs=[
                pl.BlockSpec((tn, Hp), lambda i, j: (i, 0)),
                pl.BlockSpec((Hp, tv), lambda i, j: (0, j)),
                pl.BlockSpec((1, tv), lambda i, j: (0, j)),
            ],
            out_specs=pl.BlockSpec((tn, Vp), lambda i, j: (i, 0)),
            scratch_shapes=[
                pltpu.VMEM((tn, 1), jnp.float32),        # running max
                pltpu.VMEM((tn, 1), jnp.float32),        # running sum
                pltpu.VMEM((nj, tn, tv), jnp.float32),   # stashed logits
            ]),
        compiler_params=pltpu.CompilerParams(
            dimension_semantics=("parallel", "arbitrary"),
            vmem_limit_bytes=_VMEM_LIMIT),
    )(h_pad, w_out_p, b_out_p)
    return out[:N]


# ----------------------------------------------------------------------------
# Decoder forward (wrapper = padding/reshape glue; hot paths in Pallas)
# ----------------------------------------------------------------------------
def decoder_forward(params, x_seq, emb, project_emb):
    T, B = x_seq.shape
    E = params["embedding"].shape[1]
    H = params["w_hh_t"].shape[0]
    V = params["w_out_t"].shape[1]

    B_pad = _round_up(B, 8)
    H_pad = _round_up(H, 128)
    V_pad = _round_up(V, 128)

    # Parameter padding (constant-folded under jit for fixed params).
    # Padded hidden units have zero weights/bias -> stay exactly zero through
    # the recurrence; padded vocab columns get a -1e30 bias -> exp() == 0.
    w_ih_p = _pad_gate_cols(params["w_ih_t"], H, H_pad)                 # (E, 4Hp)
    w_hh_p = _pad_to(_pad_gate_cols(params["w_hh_t"], H, H_pad), 0, H_pad)
    b_lstm_p = _pad_gate_cols(params["b_lstm"], H, H_pad)               # (1, 4Hp)
    w_out_p = _pad_to(_pad_to(params["w_out_t"], 0, H_pad), 1, V_pad)   # (Hp, Vp)
    b_out_p = _pad_to(params["b_out"], 1, V_pad, value=-1e30)           # (1, Vp)

    # Embedding lookup (gather) stays in plain JAX glue.
    # TODO(synk): fuse the gather via scalar-prefetched token ids + pl.Element
    # row blocks to avoid the HBM round trip of e_seq.
    e_seq = jnp.take(params["embedding"], x_seq, axis=0)                # (T, B, E)
    e_seq = _pad_to(e_seq, 1, B_pad)
    e2 = e_seq.reshape(T * B_pad, E)

    if project_emb:
        emb_p = _pad_to(emb, 0, B_pad)
        w2h_p = _pad_to(params["w2h_t"], 1, H_pad)
        b2h_p = _pad_to(params["b2h"], 1, H_pad)
        w2c_p = _pad_to(params["w2c_t"], 1, H_pad)
        b2c_p = _pad_to(params["b2c"], 1, H_pad)
        h0, c0 = pallas_init_state(emb_p, w2h_p, b2h_p, w2c_p, b2c_p)
    else:
        h0 = _pad_to(_pad_to(emb[0], 0, B_pad), 1, H_pad)
        c0 = _pad_to(_pad_to(emb[1], 0, B_pad), 1, H_pad)

    Tc = _time_chunk(T, B_pad, E, H_pad)
    hs2, hT, cT = pallas_lstm(e2, w_ih_p, w_hh_p, b_lstm_p, h0, c0,
                              T=T, B_pad=B_pad, Tc=Tc)                  # (T*Bp, Hp)

    logp = pallas_logits_logsoftmax(hs2, w_out_p, b_out_p)              # (T*Bp, Vp)
    logp = logp.reshape(T, B_pad, V_pad)[:, :B, :V]
    return logp, hT[:B, :H], cT[:B, :H]


# ----------------------------------------------------------------------------
# Pure-JAX reference (for correctness check)
# ----------------------------------------------------------------------------
def decoder_forward_ref(params, x_seq, emb, project_emb):
    T, B = x_seq.shape
    e_seq = jnp.take(params["embedding"], x_seq, axis=0)

    if project_emb:
        h0 = emb @ params["w2h_t"] + params["b2h"]
        c0 = emb @ params["w2c_t"] + params["b2c"]
    else:
        h0, c0 = emb[0], emb[1]

    H = h0.shape[1]

    def step(carry, e):
        h, c = carry
        gates = e @ params["w_ih_t"] + h @ params["w_hh_t"] + params["b_lstm"]
        i = jax.nn.sigmoid(gates[:, 0 * H:1 * H])
        f = jax.nn.sigmoid(gates[:, 1 * H:2 * H])
        g = jnp.tanh(gates[:, 2 * H:3 * H])
        o = jax.nn.sigmoid(gates[:, 3 * H:4 * H])
        c_new = f * c + i * g
        h_new = o * jnp.tanh(c_new)
        return (h_new, c_new), h_new

    (hT, cT), hs = lax.scan(step, (h0, c0), e_seq)
    logits = hs.reshape(-1, H) @ params["w_out_t"] + params["b_out"]
    logp = jax.nn.log_softmax(logits, axis=-1)
    return logp.reshape(T, -1, logits.shape[-1]), hT, cT


# ----------------------------------------------------------------------------
# Deterministic parameter init (shapes per Decoder.__init__)
# ----------------------------------------------------------------------------
def init_params(key, vocab_size, d_embed, d_hidden, d_word_emb):
    ks = jax.random.split(key, 10)
    s = 0.1
    return {
        "embedding": s * jax.random.normal(ks[0], (vocab_size, d_embed), jnp.float32),
        # LSTMCell weights, stored pre-transposed: (in, 4H) / (H, 4H)
        "w_ih_t": s * jax.random.normal(ks[1], (d_embed, 4 * d_hidden), jnp.float32),
        "w_hh_t": s * jax.random.normal(ks[2], (d_hidden, 4 * d_hidden), jnp.float32),
        "b_lstm": s * jax.random.normal(ks[3], (1, 4 * d_hidden), jnp.float32),  # b_ih+b_hh
        # Output linear: (H, V)
        "w_out_t": s * jax.random.normal(ks[4], (d_hidden, vocab_size), jnp.float32),
        "b_out": s * jax.random.normal(ks[5], (1, vocab_size), jnp.float32),
        # JHCE projections: (d_word_emb, H)
        "w2h_t": s * jax.random.normal(ks[6], (d_word_emb, d_hidden), jnp.float32),
        "b2h": s * jax.random.normal(ks[7], (1, d_hidden), jnp.float32),
        "w2c_t": s * jax.random.normal(ks[8], (d_word_emb, d_hidden), jnp.float32),
        "b2c": s * jax.random.normal(ks[9], (1, d_hidden), jnp.float32),
    }


def _check(a, b, atol=1e-4, rtol=1e-4):
    assert jnp.allclose(a, b, atol=atol, rtol=rtol), float(jnp.max(jnp.abs(a - b)))


if __name__ == "__main__":
    key = jax.random.PRNGKey(0)

    # ---------------- config 1: toy shapes, both projectEmb paths -----------
    vocab_size, d_embed, d_hidden, d_word_emb = 32, 16, 32, 24
    T, B = 8, 2
    k_par, k_tok, k_emb, k_state, k2 = jax.random.split(key, 5)

    params = init_params(k_par, vocab_size, d_embed, d_hidden, d_word_emb)
    x_seq = jax.random.randint(k_tok, (T, B), 0, vocab_size, dtype=jnp.int32)
    emb = 0.1 * jax.random.normal(k_emb, (B, d_word_emb), jnp.float32)

    logp, hT, cT = decoder_forward(params, x_seq, emb, project_emb=True)
    logp = jax.block_until_ready(logp)
    hT = jax.block_until_ready(hT)
    cT = jax.block_until_ready(cT)

    logp_r, hT_r, cT_r = decoder_forward_ref(params, x_seq, emb, project_emb=True)
    assert logp.shape == (T, B, vocab_size)
    assert hT.shape == (B, d_hidden) and cT.shape == (B, d_hidden)
    _check(logp, logp_r); _check(hT, hT_r); _check(cT, cT_r)

    emb_hc = 0.1 * jax.random.normal(k_state, (2, B, d_hidden), jnp.float32)
    logp2, hT2, cT2 = decoder_forward(params, x_seq, emb_hc, project_emb=False)
    logp2 = jax.block_until_ready(logp2)
    logp2_r, hT2_r, cT2_r = decoder_forward_ref(params, x_seq, emb_hc, project_emb=False)
    _check(logp2, logp2_r); _check(hT2, hT2_r); _check(cT2, cT2_r)

    # -------- config 2: odd sizes -> exercises B/H/V padding, multiple ------
    # -------- time chunks (T=6 -> Tc=2) and multiple vocab tiles (nj=5) -----
    vocab2, d_embed2, d_hidden2, d_wemb2 = 520, 16, 40, 24
    T2, B2 = 6, 3
    k_par2, k_tok2, k_emb2 = jax.random.split(k2, 3)
    params2 = init_params(k_par2, vocab2, d_embed2, d_hidden2, d_wemb2)
    x_seq2 = jax.random.randint(k_tok2, (T2, B2), 0, vocab2, dtype=jnp.int32)
    emb2 = 0.1 * jax.random.normal(k_emb2, (B2, d_wemb2), jnp.float32)

    logp3, hT3, cT3 = decoder_forward(params2, x_seq2, emb2, project_emb=True)
    logp3 = jax.block_until_ready(logp3)
    logp3_r, hT3_r, cT3_r = decoder_forward_ref(params2, x_seq2, emb2, project_emb=True)
    assert logp3.shape == (T2, B2, vocab2)
    _check(logp3, logp3_r); _check(hT3, hT3_r); _check(cT3, cT3_r)

    print("KERNEL_OK")
</pallas_src>

<mosaic_0001>
module attributes {stable_mosaic.version = 11 : i64} {
  func.func @_init_state_kernel(%arg0: i32, %arg1: memref<8x24xf32, #tpu.memory_space<vmem>>, %arg2: memref<24x128xf32, #tpu.memory_space<vmem>>, %arg3: memref<1x128xf32, #tpu.memory_space<vmem>>, %arg4: memref<24x128xf32, #tpu.memory_space<vmem>>, %arg5: memref<1x128xf32, #tpu.memory_space<vmem>>, %arg6: memref<8x128xf32, #tpu.memory_space<vmem>>, %arg7: memref<8x128xf32, #tpu.memory_space<vmem>>) attributes {dimension_semantics = [#tpu.dimension_semantics<parallel>], iteration_bounds = array<i64: 1>, scalar_prefetch = 0 : i64, scratch_operands = 0 : i64, tpu.core_type = #tpu.core_type<tc>, window_params = [{transform_indices = @transform_0, window_bounds = array<i64: 8, 24>}, {pipeline_mode = #tpu.pipeline_mode<synchronous>, transform_indices = @transform_1, window_bounds = array<i64: 24, 128>}, {pipeline_mode = #tpu.pipeline_mode<synchronous>, transform_indices = @transform_2, window_bounds = array<i64: 1, 128>}, {pipeline_mode = #tpu.pipeline_mode<synchronous>, transform_indices = @transform_3, window_bounds = array<i64: 24, 128>}, {pipeline_mode = #tpu.pipeline_mode<synchronous>, transform_indices = @transform_4, window_bounds = array<i64: 1, 128>}, {transform_indices = @transform_5, window_bounds = array<i64: 8, 128>}, {transform_indices = @transform_6, window_bounds = array<i64: 8, 128>}]} {
    %c0 = arith.constant 0 : index
    %c0_0 = arith.constant 0 : index
    %0 = vector.load %arg1[%c0, %c0_0] : memref<8x24xf32, #tpu.memory_space<vmem>>, vector<8x24xf32>
    %c0_1 = arith.constant 0 : index
    %c0_2 = arith.constant 0 : index
    %1 = vector.load %arg2[%c0_1, %c0_2] : memref<24x128xf32, #tpu.memory_space<vmem>>, vector<24x128xf32>
    %cst = arith.constant dense<0.000000e+00> : vector<8x128xf32>
    %2 = tpu.matmul %0, %1, %cst {dimension_numbers = #tpu.dot_dimension_numbers<[1], [0], [0], [1], [0, 0, 1, 1], [], []>} : vector<8x24xf32>, vector<24x128xf32>, vector<8x128xf32> -> vector<8x128xf32>
    %c0_3 = arith.constant 0 : index
    %c0_4 = arith.constant 0 : index
    %3 = vector.load %arg3[%c0_3, %c0_4] : memref<1x128xf32, #tpu.memory_space<vmem>>, vector<1x128xf32>
    %4 = vector.broadcast %3 : vector<1x128xf32> to vector<8x128xf32>
    %5 = arith.addf %2, %4 : vector<8x128xf32>
    %c0_5 = arith.constant 0 : index
    %c0_6 = arith.constant 0 : index
    %6 = vector.load %arg6[%c0_5, %c0_6] : memref<8x128xf32, #tpu.memory_space<vmem>>, vector<8x128xf32>
    tpu.vector_store %arg6[%c0_5, %c0_6], %5 {strides = array<i32>} : memref<8x128xf32, #tpu.memory_space<vmem>>, vector<8x128xf32>,
    %c0_7 = arith.constant 0 : index
    %c0_8 = arith.constant 0 : index
    %7 = vector.load %arg1[%c0_7, %c0_8] : memref<8x24xf32, #tpu.memory_space<vmem>>, vector<8x24xf32>
    %c0_9 = arith.constant 0 : index
    %c0_10 = arith.constant 0 : index
    %8 = vector.load %arg4[%c0_9, %c0_10] : memref<24x128xf32, #tpu.memory_space<vmem>>, vector<24x128xf32>
    %cst_11 = arith.constant dense<0.000000e+00> : vector<8x128xf32>
    %9 = tpu.matmul %7, %8, %cst_11 {dimension_numbers = #tpu.dot_dimension_numbers<[1], [0], [0], [1], [0, 0, 1, 1], [], []>} : vector<8x24xf32>, vector<24x128xf32>, vector<8x128xf32> -> vector<8x128xf32>
    %c0_12 = arith.constant 0 : index
    %c0_13 = arith.constant 0 : index
    %10 = vector.load %arg5[%c0_12, %c0_13] : memref<1x128xf32, #tpu.memory_space<vmem>>, vector<1x128xf32>
    %11 = vector.broadcast %10 : vector<1x128xf32> to vector<8x128xf32>
    %12 = arith.addf %9, %11 : vector<8x128xf32>
    %c0_14 = arith.constant 0 : index
    %c0_15 = arith.constant 0 : index
    %13 = vector.load %arg7[%c0_14, %c0_15] : memref<8x128xf32, #tpu.memory_space<vmem>>, vector<8x128xf32>
    tpu.vector_store %arg7[%c0_14, %c0_15], %12 {strides = array<i32>} : memref<8x128xf32, #tpu.memory_space<vmem>>, vector<8x128xf32>,
    return
  }
  func.func @transform_0(%arg0: i32) -> (i32, i32) {
    %c0_i32 = arith.constant 0 : i32
    %c0_i32_0 = arith.constant 0 : i32
    return %arg0, %c0_i32 : i32, i32
  }
  func.func @transform_1(%arg0: i32) -> (i32, i32) {
    %c0_i32 = arith.constant 0 : i32
    %c0_i32_0 = arith.constant 0 : i32
    %c0_i32_1 = arith.constant 0 : i32
    return %c0_i32, %c0_i32_0 : i32, i32
  }
  func.func @transform_2(%arg0: i32) -> (i32, i32) {
    %c0_i32 = arith.constant 0 : i32
    %c0_i32_0 = arith.constant 0 : i32
    %c0_i32_1 = arith.constant 0 : i32
    return %c0_i32, %c0_i32_0 : i32, i32
  }
  func.func @transform_3(%arg0: i32) -> (i32, i32) {
    %c0_i32 = arith.constant 0 : i32
    %c0_i32_0 = arith.constant 0 : i32
    %c0_i32_1 = arith.constant 0 : i32
    return %c0_i32, %c0_i32_0 : i32, i32
  }
  func.func @transform_4(%arg0: i32) -> (i32, i32) {
    %c0_i32 = arith.constant 0 : i32
    %c0_i32_0 = arith.constant 0 : i32
    %c0_i32_1 = arith.constant 0 : i32
    return %c0_i32, %c0_i32_0 : i32, i32
  }
  func.func @transform_5(%arg0: i32) -> (i32, i32) {
    %c0_i32 = arith.constant 0 : i32
    %c0_i32_0 = arith.constant 0 : i32
    return %arg0, %c0_i32 : i32, i32
  }
  func.func @transform_6(%arg0: i32) -> (i32, i32) {
    %c0_i32 = arith.constant 0 : i32
    %c0_i32_0 = arith.constant 0 : i32
    return %arg0, %c0_i32 : i32, i32
  }
}

</mosaic_0001>

<llo_original>
// kernel: tpu_custom_call.1
$region0: #{tpu_custom_call.1}
  #allocation0 [shape = 'u32[]', space=smem, size = 0x4, offset = 0x4, fixed_abs, tag = 'smem constant byte address 0x4 - core index']
  #allocation1 [shape = 'u32[144,128]{1,0:T(1,128)}', space=vmem, size = 0x12000, scoped, tag = 'internal scratch']
  %s0 = inlined_call_operand.hbm [shape: f32[8,24], index: 0, kind: input, shape index: {}]
  %s1 = inlined_call_operand.hbm [shape: f32[24,128], index: 1, kind: input, shape index: {}]
  %s2 = inlined_call_operand.vmem [shape: f32[1,128], index: 2, kind: input, shape index: {}]
  %s3 = inlined_call_operand.hbm [shape: f32[24,128], index: 3, kind: input, shape index: {}]
  %s4 = inlined_call_operand.vmem [shape: f32[1,128], index: 4, kind: input, shape index: {}]
  %s5 = inlined_call_operand.hbm [shape: f32[8,128], index: 5, kind: output, shape index: {0}]
  %s6 = inlined_call_operand.hbm [shape: f32[8,128], index: 6, kind: output, shape index: {1}]
  %7 = xla_tuple %s5, %s6
  %s8 = sld [smem:[#allocation0]]
  $region50: #{tpu_custom_call.1} parent=0
    _
  %s10 = ssub.s32 1, %s8
  %s11 = scalar_select 0, %s10, %s8
  $region1: #{tpu_custom_call.1} parent=0
    #allocation2 [shape = 'u8[4096]{0}', space=vmem, size = 0x1000, scoped, tag = 'input window, operand 0, single buffered']
    #allocation3 [shape = 's32[1]{0}', space=sflag, size = 0x4, scoped, tag = 'scoped memory for tpu_custom_call.1']
    #allocation4 [shape = 's32[1]{0}', space=sflag, size = 0x4, scoped, tag = 'scoped memory for tpu_custom_call.1']
    #allocation5 [shape = 'u8[12288]{0}', space=vmem, size = 0x3000, scoped, tag = 'input window, operand 1, single buffered']
    #allocation6 [shape = 's32[1]{0}', space=sflag, size = 0x4, scoped, tag = 'scoped memory for tpu_custom_call.1']
    #allocation7 [shape = 'u8[12288]{0}', space=vmem, size = 0x3000, scoped, tag = 'input window, operand 3, single buffered']
    #allocation8 [shape = 'u8[4096]{0}', space=vmem, size = 0x1000, scoped, tag = 'output window, operand 0, single buffered']
    #allocation9 [shape = 'u8[4096]{0}', space=vmem, size = 0x1000, scoped, tag = 'output window, operand 1, single buffered']
    #allocation10 [shape = 's32[1]{0}', space=sflag, size = 0x4, scoped, tag = 'scoped memory for tpu_custom_call.1']
    %12 = vsyncpa [#allocation3], 0
    %13 = vsyncpa [#allocation6], 0
    %14 = vsyncpa [#allocation4], 0
    %15 = vsyncpa [#allocation10], 0
    // Predicated region
    $region2: #{tpu_custom_call.1} parent=1 // pred_check
      _
    $region3: #{tpu_custom_call.1} parent=1 // pred_check_branch
      %17 = sbr.rel (0) target = $region5
    $region4: #{tpu_custom_call.1} parent=1 // pred_region
      %s19 = ssub.s32 128, 128
      %20 = vsyncadd [#allocation3], %s19
      %s22 = sshll.u32 [#allocation2], 4
      %s23 = int_to_ptr.vmem [resolvable:$true] %s22
      %25 = dma.hbm_to_vmem [thread:$0]  %s0, 128, %s23, [#allocation3]
    $region5: #{tpu_custom_call.1} parent=1 // pred_fallthru
      _
    // Predicated region
    $region6: #{tpu_custom_call.1} parent=1 // pred_check
      _
    $region7: #{tpu_custom_call.1} parent=1 // pred_check_branch
      %27 = sbr.rel (0) target = $region9
    $region8: #{tpu_custom_call.1} parent=1 // pred_region
      %s29 = ssub.s32 384, 384
      %30 = vsyncadd [#allocation6], %s29
      %s31 = sshll.u32 [#allocation5], 4
      %s32 = int_to_ptr.vmem [resolvable:$true] %s31
      %37 = dma.hbm_to_vmem [thread:$0]  %s1, 384, %s32, [#allocation6], 128, 128, 8
    $region9: #{tpu_custom_call.1} parent=1 // pred_fallthru
      _
    // Predicated region
    $region10: #{tpu_custom_call.1} parent=1 // pred_check
      _
    $region11: #{tpu_custom_call.1} parent=1 // pred_check_branch
      %39 = sbr.rel (0) target = $region13
    $region12: #{tpu_custom_call.1} parent=1 // pred_region
      _
    $region13: #{tpu_custom_call.1} parent=1 // pred_fallthru
      _
    // Predicated region
    $region14: #{tpu_custom_call.1} parent=1 // pred_check
      _
    $region15: #{tpu_custom_call.1} parent=1 // pred_check_branch
      %41 = sbr.rel (0) target = $region17
    $region16: #{tpu_custom_call.1} parent=1 // pred_region
      %s43 = ssub.s32 384, 384
      %44 = vsyncadd [#allocation6], %s43
      %s45 = sshll.u32 [#allocation7], 4
      %s46 = int_to_ptr.vmem [resolvable:$true] %s45
      %51 = dma.hbm_to_vmem [thread:$0]  %s3, 384, %s46, [#allocation6], 128, 128, 8
    $region17: #{tpu_custom_call.1} parent=1 // pred_fallthru
      _
    // Predicated region
    $region18: #{tpu_custom_call.1} parent=1 // pred_check
      _
    $region19: #{tpu_custom_call.1} parent=1 // pred_check_branch
      %53 = sbr.rel (0) target = $region21
    $region20: #{tpu_custom_call.1} parent=1 // pred_region
      _
    $region21: #{tpu_custom_call.1} parent=1 // pred_fallthru
      _
    // Predicated region
    $region22: #{tpu_custom_call.1} parent=1 // pred_check
      _
    $region23: #{tpu_custom_call.1} parent=1 // pred_check_branch
      %55 = sbr.rel (0) target = $region25
    $region24: #{tpu_custom_call.1} parent=1 // pred_region
      %56 = dma.done [#allocation3], 128
    $region25: #{tpu_custom_call.1} parent=1 // pred_fallthru
      _
    // Predicated region
    $region26: #{tpu_custom_call.1} parent=1 // pred_check
      _
    $region27: #{tpu_custom_call.1} parent=1 // pred_check_branch
      %58 = sbr.rel (0) target = $region29
    $region28: #{tpu_custom_call.1} parent=1 // pred_region
      %59 = dma.done [#allocation6], 384
    $region29: #{tpu_custom_call.1} parent=1 // pred_fallthru
      _
    // Predicated region
    $region30: #{tpu_custom_call.1} parent=1 // pred_check
      _
    $region31: #{tpu_custom_call.1} parent=1 // pred_check_branch
      %61 = sbr.rel (0) target = $region33
    $region32: #{tpu_custom_call.1} parent=1 // pred_region
      %62 = dma.done [#allocation6], 384
    $region33: #{tpu_custom_call.1} parent=1 // pred_fallthru
      _
    %v63 = vld [vmem:[#allocation2] sm:$0xff]
    %v64 = vld [vmem:[#allocation5] sm:$0xff]
    %v65 = vld [vmem:[#allocation5 + $0x8] sm:$0xff]
    %v66 = vld [vmem:[#allocation5 + $0x10] sm:$0xff]
    %v67 = vld [vmem:[%s2] sm:$0x1]
    %v69 = vlaneseq
    %v70 = vshrl.u32 %v69, 7
    %v71 = vsub.s32 0, %v70
    %v72 = vrot.slane %v67, %v71
    %vm74 = vcmask 195584
    %v76 = vsel %vm74, %v63, 0
    %78 = vmatprep.subr.mxu0 0.0
    %79 = vmatpush1.msra.mxu0 %v64
    %80 = vmatprep.subr.mxu0 0.0
    %81 = vmatpush1.msra.mxu0 %v65
    %82 = vmatprep.subr.mxu0 0.0
    %83 = vmatpush1.msra.mxu0 %v66
    %84 = vmatprep.subr.mxu0 0.0
    %85 = vmatpush1.msra.mxu0 0.0
    %86 = vmatprep.subr.mxu0 0.0
    %87 = vmatpush1.msra.mxu0 0.0
    %88 = vmatprep.subr.mxu0 0.0
    %89 = vmatpush1.msra.mxu0 0.0
    %90 = vmatprep.subr.mxu0 0.0
    %91 = vmatpush1.msra.mxu0 0.0
    %92 = vmatprep.subr.mxu0 0.0
    %93 = vmatpush1.msra.mxu0 0.0
    %94 = vmatprep.subr.mxu0 0.0
    %95 = vmatpush1.msra.mxu0 0.0
    %96 = vmatprep.subr.mxu0 0.0
    %97 = vmatpush1.msra.mxu0 0.0
    %98 = vmatprep.subr.mxu0 0.0
    %99 = vmatpush1.msra.mxu0 0.0
    %100 = vmatprep.subr.mxu0 0.0
    %101 = vmatpush1.msra.mxu0 0.0
    %102 = vmatprep.subr.mxu0 0.0
    %103 = vmatpush1.msra.mxu0 0.0
    %104 = vmatprep.subr.mxu0 0.0
    %105 = vmatpush1.msra.mxu0 0.0
    %106 = vmatprep.subr.mxu0 0.0
    %107 = vmatpush1.msra.mxu0 0.0
    %108 = vmatprep.subr.mxu0 0.0
    %109 = vmatpush1.msra.mxu0 0.0
    %110 = vmatprep.subr.mxu0 0.0
    %111 = vmatpush1.msra.mxu0 0.0
    %112 = vmatprep.subr.mxu0 0.0
    %113 = vmatpush1.msra.mxu0 0.0
    %114 = vmatprep.subr.mxu0 0.0
    %115 = vmatpush1.msra.mxu0 0.0
    %116 = vmatprep.subr.mxu0 0.0
    %117 = vmatpush1.msra.mxu0 0.0
    %118 = vmatprep.subr.mxu0 0.0
    %119 = vmatpush1.msra.mxu0 0.0
    %120 = vmatprep.subr.mxu0 0.0
    %121 = vmatpush1.msra.mxu0 0.0
    %122 = vmatprep.subr.mxu0 0.0
    %123 = vmatpush1.msra.mxu0 0.0
    %124 = vmatprep.subr.mxu0 0.0
    %125 = vmatpush1.msra.mxu0 0.0
    %126 = vmatprep.subr.mxu0 0.0
    %127 = vmatpush1.msra.mxu0 0.0
    %128 = vmatprep.subr.mxu0 0.0
    %129 = vmatpush1.msra.mxu0 0.0
    %130 = vmatprep.subr.mxu0 0.0
    %131 = vmatpush1.msra.mxu0 0.0
    %132 = vmatprep.subr.mxu0 0.0
    %133 = vmatpush1.msra.mxu0 0.0
    %134 = vmatprep.subr.mxu0 0.0
    %135 = vmatpush1.msra.mxu0 0.0
    %136 = vmatprep.subr.mxu0 0.0
    %137 = vmatpush1.msra.mxu0 0.0
    %138 = vmatprep.subr.mxu0 0.0
    %139 = vmatpush1.msra.mxu0 0.0
    %140 = vmatprep.subr.mxu0 0.0
    %141 = vmatpush1.msra.mxu0 0.0
    %142 = vmatprep.mubr.f32.mxu0 0.0
    %143 = vmatmul.mubr.f32.gmra.mrb[0].mxu0 %v76
    %v144 = vpop.f32.mrb[0].mxu0
    %v145 = vadd.f32 %v72, %v144
    %v146 = vpop.f32.mrb[0].mxu0
    %147 = vdwg.mxu0
    %148 = vst [vmem:[#allocation8] sm:$0xff] %v145
    %v149 = vld [vmem:[#allocation2] sm:$0xff]
    %v150 = vld [vmem:[#allocation7] sm:$0xff]
    %v151 = vld [vmem:[#allocation7 + $0x8] sm:$0xff]
    %v152 = vld [vmem:[#allocation7 + $0x10] sm:$0xff]
    %v153 = vld [vmem:[%s4] sm:$0x1]
    %v155 = vlaneseq
    %v156 = vshrl.u32 %v155, 7
    %v157 = vsub.s32 0, %v156
    %v158 = vrot.slane %v153, %v157
    %v161 = vsel %vm74, %v149, 0
    %163 = vmatprep.subr.mxu0 0.0
    %164 = vmatpush1.msra.mxu0 %v150
    %165 = vmatprep.subr.mxu0 0.0
    %166 = vmatpush1.msra.mxu0 %v151
    %167 = vmatprep.subr.mxu0 0.0
    %168 = vmatpush1.msra.mxu0 %v152
    %169 = vmatprep.subr.mxu0 0.0
    %170 = vmatpush1.msra.mxu0 0.0
    %171 = vmatprep.subr.mxu0 0.0
    %172 = vmatpush1.msra.mxu0 0.0
    %173 = vmatprep.subr.mxu0 0.0
    %174 = vmatpush1.msra.mxu0 0.0
    %175 = vmatprep.subr.mxu0 0.0
    %176 = vmatpush1.msra.mxu0 0.0
    %177 = vmatprep.subr.mxu0 0.0
    %178 = vmatpush1.msra.mxu0 0.0
    %179 = vmatprep.subr.mxu0 0.0
    %180 = vmatpush1.msra.mxu0 0.0
    %181 = vmatprep.subr.mxu0 0.0
    %182 = vmatpush1.msra.mxu0 0.0
    %183 = vmatprep.subr.mxu0 0.0
    %184 = vmatpush1.msra.mxu0 0.0
    %185 = vmatprep.subr.mxu0 0.0
    %186 = vmatpush1.msra.mxu0 0.0
    %187 = vmatprep.subr.mxu0 0.0
    %188 = vmatpush1.msra.mxu0 0.0
    %189 = vmatprep.subr.mxu0 0.0
    %190 = vmatpush1.msra.mxu0 0.0
    %191 = vmatprep.subr.mxu0 0.0
    %192 = vmatpush1.msra.mxu0 0.0
    %193 = vmatprep.subr.mxu0 0.0
    %194 = vmatpush1.msra.mxu0 0.0
    %195 = vmatprep.subr.mxu0 0.0
    %196 = vmatpush1.msra.mxu0 0.0
    %197 = vmatprep.subr.mxu0 0.0
    %198 = vmatpush1.msra.mxu0 0.0
    %199 = vmatprep.subr.mxu0 0.0
    %200 = vmatpush1.msra.mxu0 0.0
    %201 = vmatprep.subr.mxu0 0.0
    %202 = vmatpush1.msra.mxu0 0.0
    %203 = vmatprep.subr.mxu0 0.0
    %204 = vmatpush1.msra.mxu0 0.0
    %205 = vmatprep.subr.mxu0 0.0
    %206 = vmatpush1.msra.mxu0 0.0
    %207 = vmatprep.subr.mxu0 0.0
    %208 = vmatpush1.msra.mxu0 0.0
    %209 = vmatprep.subr.mxu0 0.0
    %210 = vmatpush1.msra.mxu0 0.0
    %211 = vmatprep.subr.mxu0 0.0
    %212 = vmatpush1.msra.mxu0 0.0
    %213 = vmatprep.subr.mxu0 0.0
    %214 = vmatpush1.msra.mxu0 0.0
    %215 = vmatprep.subr.mxu0 0.0
    %216 = vmatpush1.msra.mxu0 0.0
    %217 = vmatprep.subr.mxu0 0.0
    %218 = vmatpush1.msra.mxu0 0.0
    %219 = vmatprep.subr.mxu0 0.0
    %220 = vmatpush1.msra.mxu0 0.0
    %221 = vmatprep.subr.mxu0 0.0
    %222 = vmatpush1.msra.mxu0 0.0
    %223 = vmatprep.subr.mxu0 0.0
    %224 = vmatpush1.msra.mxu0 0.0
    %225 = vmatprep.subr.mxu0 0.0
    %226 = vmatpush1.msra.mxu0 0.0
    %227 = vmatprep.mubr.f32.mxu0 0.0
    %228 = vmatmul.mubr.f32.gmra.mrb[0].mxu0 %v161
    %v229 = vpop.f32.mrb[0].mxu0
    %v230 = vadd.f32 %v158, %v229
    %v231 = vpop.f32.mrb[0].mxu0
    %232 = vdwg.mxu0
    %233 = vst [vmem:[#allocation9] sm:$0xff] %v230
    // Predicated region
    $region34: #{tpu_custom_call.1} parent=1 // pred_check
      _
    $region35: #{tpu_custom_call.1} parent=1 // pred_check_branch
      %235 = sbr.rel (0) target = $region37
    $region36: #{tpu_custom_call.1} parent=1 // pred_region
      %s237 = ssub.s32 128, 128
      %238 = vsyncadd [#allocation4], %s237
      %s240 = sshll.u32 [#allocation8], 4
      %s241 = int_to_ptr.vmem [resolvable:$true] %s240
      %243 = dma.vmem_to_hbm [thread:$0]  %s241, 128, %s5, [#allocation4]
    $region37: #{tpu_custom_call.1} parent=1 // pred_fallthru
      _
    // Predicated region
    $region38: #{tpu_custom_call.1} parent=1 // pred_check
      _
    $region39: #{tpu_custom_call.1} parent=1 // pred_check_branch
      %245 = sbr.rel (0) target = $region41
    $region40: #{tpu_custom_call.1} parent=1 // pred_region
      %s247 = ssub.s32 128, 128
      %248 = vsyncadd [#allocation10], %s247
      %s250 = sshll.u32 [#allocation9], 4
      %s251 = int_to_ptr.vmem [resolvable:$true] %s250
      %253 = dma.vmem_to_hbm [thread:$0]  %s251, 128, %s6, [#allocation10]
    $region41: #{tpu_custom_call.1} parent=1 // pred_fallthru
      _
    // Predicated region
    $region42: #{tpu_custom_call.1} parent=1 // pred_check
      _
    $region43: #{tpu_custom_call.1} parent=1 // pred_check_branch
      %255 = sbr.rel (0) target = $region45
    $region44: #{tpu_custom_call.1} parent=1 // pred_region
      %256 = dma.done [#allocation4], 128
    $region45: #{tpu_custom_call.1} parent=1 // pred_fallthru
      _
    // Predicated region
    $region46: #{tpu_custom_call.1} parent=1 // pred_check
      _
    $region47: #{tpu_custom_call.1} parent=1 // pred_check_branch
      %258 = sbr.rel (0) target = $region49
    $region48: #{tpu_custom_call.1} parent=1 // pred_region
      %259 = dma.done [#allocation10], 128
    $region49: #{tpu_custom_call.1} parent=1 // pred_fallthru
      _
    %260 = vsyncpa [#allocation3], 1
    %261 = vsyncpa [#allocation6], 1
    %262 = vsyncpa [#allocation4], 1
    %263 = vsyncpa [#allocation10], 1

</llo_original>
